<compile_context>
chip_gen: v7x
topology: tpu7x:2x2x1
jax: 0.10.0
libtpu: 0.0.40
codegen_flags: <defaults>
</compile_context>

<pallas_src>
import jax
import jax.numpy as jnp
from jax.experimental import pallas as pl
from jax.experimental.pallas import tpu as pltpu


# -----------------------------------------------------------------------------
# Kernel
# -----------------------------------------------------------------------------
def basic_block_kernel(x_ref, w1_ref, w2_ref, p_ref, o_ref):
    TB, H, D = x_ref.shape                        # D = W * C (lane-dense)
    M = TB * H
    x = x_ref[...].reshape(M, D)                  # merge batch+rows -> MXU M dim
    p = p_ref[...]                                # (8, D) per-channel params (lane-tiled)

    def row(i):                                   # (1, D) broadcast row, computed once
        return p[i].reshape(1, D)

    mv11, b1, mv13, mv21, b2, mv23, pre1, pre2 = (row(i) for i in range(8))

    def sign(v):
        # TODO(synk): BinaryNode surrogate gradient has no forward-only equivalent;
        #             forward value is sign(v) with 0 -> 0 (matches torch.sign).
        one = jnp.ones_like(v)
        return jnp.where(v > 0.0, one, jnp.where(v < 0.0, -one, jnp.zeros_like(v)))

    def conv3x3_bn(v, w_ref):
        """3x3/stride-1/pad-1 conv (+ folded BN scale) of sign(v) on a lane-dense slab.

        v: (M, D) f32 pre-activation.  w_ref: (3*D, D) bf16 fused banded weight —
        row blocks are the ky = 0/1/2 bands, each band folds the (kx, Cin)->Cout
        contraction and the W-edge zero padding; BN scale is pre-folded into the
        output columns.  The ky offset is realized by per-sample zero-padded row
        shifts of the bf16 sign slab; the three shifted copies are lane-concatenated
        into one (M, 3*D) LHS so the conv is a single MXU contraction.
        """
        s = sign(v).astype(jnp.bfloat16)          # lossless: values in {-1, 0, +1}
        s3 = s.reshape(TB, H, D)
        zrow = jnp.zeros((TB, 1, D), jnp.bfloat16)
        up = jnp.concatenate([zrow, s3[:, : H - 1, :]], axis=1).reshape(M, D)  # s[h-1]
        dn = jnp.concatenate([s3[:, 1:, :], zrow], axis=1).reshape(M, D)       # s[h+1]
        lhs = jnp.concatenate([up, s, dn], axis=1)                             # (M, 3D)
        return jnp.dot(lhs, w_ref[...], preferred_element_type=jnp.float32)    # (M, D)

    def prelu(v, w):
        return jnp.where(v >= 0.0, v, v * w)

    # branch 1: move11 -> sign -> conv*bn1_scale -> (+x) -> (+bn1_shift+mv12) -> prelu1 -> +mv13
    out1 = x + conv3x3_bn(x + mv11, w1_ref) + b1
    out1 = prelu(out1, pre1) + mv13

    # branch 2 (inplanes == planes path)
    out2 = out1 + conv3x3_bn(out1 + mv21, w2_ref) + b2
    out2 = prelu(out2, pre2) + mv23

    o_ref[...] = out2.reshape(TB, H, D)


# -----------------------------------------------------------------------------
# Wrapper
# -----------------------------------------------------------------------------
def _choose_tb(N, H, target_rows=256):
    """Largest TB dividing N with TB*H <= target_rows, preferring >= 2 grid steps."""
    cap = max(1, target_rows // H)
    divisors = [d for d in range(1, N + 1) if N % d == 0]
    cands = [d for d in divisors if d <= cap and N // d >= 2]   # v7x: keep 2+ steps
    if not cands:
        cands = [d for d in divisors if d <= cap] or [1]
    return max(cands)


def basic_block_forward_slab(x_slab, packed_params):
    """Lane-dense (N, H, W*C) f32 in / out — the layout to keep between stacked blocks."""
    w1m, w2m, p_lane = packed_params
    N, H, D = x_slab.shape
    TB = _choose_tb(N, H)

    act_spec = pl.BlockSpec((TB, H, D), lambda n: (n, 0, 0))
    w_spec = pl.BlockSpec(w1m.shape, lambda n: (0, 0))          # constant-index weights
    p_spec = pl.BlockSpec(p_lane.shape, lambda n: (0, 0))

    return pl.pallas_call(
        basic_block_kernel,
        out_shape=jax.ShapeDtypeStruct((N, H, D), jnp.float32),
        grid=(N // TB,),
        in_specs=[act_spec, w_spec, w_spec, p_spec],
        out_specs=act_spec,
        compiler_params=pltpu.CompilerParams(
            dimension_semantics=("parallel",)),                 # megacore on v7x
    )(x_slab, w1m, w2m, p_lane)


def basic_block_forward(x_nchw, packed_params):
    """NCHW in, NCHW out (boundary transposes are layout plumbing only)."""
    # TODO(synk): stride==2 / inplanes!=planes branch (AvgPool2d + two convs + concat)
    #             not implemented; only the identity-shortcut configuration is covered.
    x = jnp.transpose(x_nchw, (0, 2, 3, 1)).astype(jnp.float32)   # NCHW -> NHWC
    N, H, W, C = x.shape
    out_slab = basic_block_forward_slab(x.reshape(N, H, W * C), packed_params)
    return jnp.transpose(out_slab.reshape(N, H, W, C), (0, 3, 1, 2))


# -----------------------------------------------------------------------------
# Parameter construction / packing
# -----------------------------------------------------------------------------
def init_params(key, C):
    """Deterministic synthetic parameters matching the module's shapes (natural form)."""
    k1, k2, k3 = jax.random.split(key, 3)
    # conv3x3 weights, HWIO (3, 3, Cin, Cout).  Pre-rounded to bf16-representable
    # values so the kernel's bf16 MXU path is lossless w.r.t. the f32 reference.
    # TODO(synk): with real trained f32 checkpoints the bf16 weight storage is a
    #             (bounded) quantization relative to the f32 reference.
    w1 = (jax.random.normal(k1, (3, 3, C, C), jnp.float32) * 0.1)
    w2 = (jax.random.normal(k2, (3, 3, C, C), jnp.float32) * 0.1)
    w1 = w1.astype(jnp.bfloat16).astype(jnp.float32)
    w2 = w2.astype(jnp.bfloat16).astype(jnp.float32)
    # LearnableBias x6 (torch init is zeros; small values to exercise broadcasting)
    moves = jax.random.normal(k3, (6, C), jnp.float32) * 0.05
    # nn.PReLU default per-channel weight = 0.25
    prelu_w = jnp.full((2, C), 0.25, jnp.float32)
    # BatchNorm2d eval form at torch init: gamma=1, beta=0, mean=0, var=1
    gamma = jnp.ones((2, C), jnp.float32)
    beta = jnp.zeros((2, C), jnp.float32)
    mean = jnp.zeros((2, C), jnp.float32)
    var = jnp.ones((2, C), jnp.float32)
    return w1, w2, moves, prelu_w, (gamma, beta, mean, var)


def pack_params(params, W):
    """Natural params -> kernel layout: fused banded bf16 conv weights (BN scale
    folded into output columns) + 8-row lane-tiled per-channel parameter slab."""
    w1, w2, moves, prelu_w, (gamma, beta, mean, var) = params
    eps = 1e-5
    scale = gamma / jnp.sqrt(var + eps)            # (2, C)
    shift = beta - mean * scale                    # (2, C)
    C = moves.shape[-1]

    def band_fused(w_hwio, sc):
        # (3,3,Ci,Co) HWIO -> (3*W*Ci, W*Co):
        #   m[ky*D + wi*Ci+ci, wo*Co+co] = w[ky, kx, ci, co] * sc[co]
        # with kx = wi - wo + 1 inside the band, zero outside -> encodes the kx
        # shift and the W-edge zero padding; BN scale folded into the columns.
        KH, KW, Ci, Co = w_hwio.shape
        mats = []
        for ky in range(KH):
            m = jnp.zeros((W * Ci, W * Co), jnp.float32)
            for kx in range(KW):
                dw = kx - 1                                    # input col = output col + dw
                sel = jnp.eye(W, W, k=-dw, dtype=jnp.float32)  # sel[wi,wo]=1 iff wi-wo==dw
                m = m + jnp.kron(sel, w_hwio[ky, kx])
            mats.append(m)
        fused = jnp.concatenate(mats, axis=0)                  # (3*D, D)
        return (fused * jnp.tile(sc, (W,))[None, :]).astype(jnp.bfloat16)

    w1m = band_fused(w1, scale[0])
    w2m = band_fused(w2, scale[1])

    b1 = shift[0] + moves[1]        # bn1 shift + move12 bias
    b2 = shift[1] + moves[4]        # bn2 shift + move22 bias
    p_chan = jnp.stack([moves[0], b1, moves[2],
                        moves[3], b2, moves[5],
                        prelu_w[0], prelu_w[1]], axis=0)       # (8, C)
    p_lane = jnp.tile(p_chan, (1, W))                          # (8, W*C); lane = w*C + ci
    return w1m, w2m, p_lane


# -----------------------------------------------------------------------------
# Pure-JAX reference (mirrors the PyTorch forward)
# -----------------------------------------------------------------------------
def reference_forward(x_nchw, params):
    w1, w2, moves, prelu_w, (gamma, beta, mean, var) = params
    eps = 1e-5
    x = jnp.transpose(x_nchw, (0, 2, 3, 1)).astype(jnp.float32)
    C = x.shape[-1]

    def b(v):
        return v.reshape(1, 1, 1, C)

    def conv(v, w):
        return jax.lax.conv_general_dilated(
            v, w, window_strides=(1, 1), padding=((1, 1), (1, 1)),
            dimension_numbers=("NHWC", "HWIO", "NHWC"))

    def bn(v, i):
        return (v - b(mean[i])) / jnp.sqrt(b(var[i]) + eps) * b(gamma[i]) + b(beta[i])

    def prelu(v, w):
        return jnp.where(v >= 0.0, v, v * w)

    out1 = jnp.sign(x + b(moves[0]))
    out1 = bn(conv(out1, w1), 0)
    out1 = x + out1
    out1 = prelu(out1 + b(moves[1]), b(prelu_w[0])) + b(moves[2])
    out2 = jnp.sign(out1 + b(moves[3]))
    out2 = bn(conv(out2, w2), 1)
    out2 = out2 + out1
    out2 = prelu(out2 + b(moves[4]), b(prelu_w[1])) + b(moves[5])
    return jnp.transpose(out2, (0, 3, 1, 2))


if __name__ == "__main__":
    key = jax.random.PRNGKey(0)
    kx, kp = jax.random.split(key)
    N, C, H, W = 8, 8, 16, 16          # inplanes = planes = 8, stride = 1; W*C = 128
    x = jax.random.normal(kx, (N, C, H, W), jnp.float32)
    params = init_params(kp, C)
    packed = pack_params(params, W)

    out = jax.block_until_ready(basic_block_forward(x, packed))
    ref = reference_forward(x, params)

    assert out.shape == (N, C, H, W), out.shape
    max_err = float(jnp.max(jnp.abs(out - ref)))
    assert max_err < 2e-4, f"max abs err {max_err}"
    print("KERNEL_OK")
</pallas_src>

<mosaic_0001>
module attributes {stable_mosaic.version = 11 : i64} {
  func.func @basic_block_kernel(%arg0: i32, %arg1: memref<4x16x128xf32, #tpu.memory_space<vmem>>, %arg2: memref<384x128xbf16, #tpu.memory_space<vmem>>, %arg3: memref<384x128xbf16, #tpu.memory_space<vmem>>, %arg4: memref<8x128xf32, #tpu.memory_space<vmem>>, %arg5: memref<4x16x128xf32, #tpu.memory_space<vmem>>) attributes {dimension_semantics = [#tpu.dimension_semantics<parallel>], iteration_bounds = array<i64: 2>, scalar_prefetch = 0 : i64, scratch_operands = 0 : i64, tpu.core_type = #tpu.core_type<tc>, window_params = [{transform_indices = @transform_0, window_bounds = array<i64: 4, 16, 128>}, {pipeline_mode = #tpu.pipeline_mode<synchronous>, transform_indices = @transform_1, window_bounds = array<i64: 384, 128>}, {pipeline_mode = #tpu.pipeline_mode<synchronous>, transform_indices = @transform_2, window_bounds = array<i64: 384, 128>}, {pipeline_mode = #tpu.pipeline_mode<synchronous>, transform_indices = @transform_3, window_bounds = array<i64: 8, 128>}, {transform_indices = @transform_4, window_bounds = array<i64: 4, 16, 128>}]} {
    %c0 = arith.constant 0 : index
    %c0_0 = arith.constant 0 : index
    %c0_1 = arith.constant 0 : index
    %0 = vector.load %arg1[%c0, %c0_0, %c0_1] : memref<4x16x128xf32, #tpu.memory_space<vmem>>, vector<4x16x128xf32>
    %1 = vector.shape_cast %0 : vector<4x16x128xf32> to vector<64x128xf32>
    %c0_2 = arith.constant 0 : index
    %c0_3 = arith.constant 0 : index
    %2 = vector.load %arg4[%c0_2, %c0_3] : memref<8x128xf32, #tpu.memory_space<vmem>>, vector<8x128xf32>
    %3 = vector.extract_strided_slice %2 {offsets = [0, 0], sizes = [1, 128], strides = [1, 1]} : vector<8x128xf32> to vector<1x128xf32>
    %4 = vector.shape_cast %3 : vector<1x128xf32> to vector<128xf32>
    %5 = vector.shape_cast %4 : vector<128xf32> to vector<1x128xf32>
    %6 = vector.extract_strided_slice %2 {offsets = [1, 0], sizes = [1, 128], strides = [1, 1]} : vector<8x128xf32> to vector<1x128xf32>
    %7 = vector.shape_cast %6 : vector<1x128xf32> to vector<128xf32>
    %8 = vector.shape_cast %7 : vector<128xf32> to vector<1x128xf32>
    %9 = vector.extract_strided_slice %2 {offsets = [2, 0], sizes = [1, 128], strides = [1, 1]} : vector<8x128xf32> to vector<1x128xf32>
    %10 = vector.shape_cast %9 : vector<1x128xf32> to vector<128xf32>
    %11 = vector.shape_cast %10 : vector<128xf32> to vector<1x128xf32>
    %12 = vector.extract_strided_slice %2 {offsets = [3, 0], sizes = [1, 128], strides = [1, 1]} : vector<8x128xf32> to vector<1x128xf32>
    %13 = vector.shape_cast %12 : vector<1x128xf32> to vector<128xf32>
    %14 = vector.shape_cast %13 : vector<128xf32> to vector<1x128xf32>
    %15 = vector.extract_strided_slice %2 {offsets = [4, 0], sizes = [1, 128], strides = [1, 1]} : vector<8x128xf32> to vector<1x128xf32>
    %16 = vector.shape_cast %15 : vector<1x128xf32> to vector<128xf32>
    %17 = vector.shape_cast %16 : vector<128xf32> to vector<1x128xf32>
    %18 = vector.extract_strided_slice %2 {offsets = [5, 0], sizes = [1, 128], strides = [1, 1]} : vector<8x128xf32> to vector<1x128xf32>
    %19 = vector.shape_cast %18 : vector<1x128xf32> to vector<128xf32>
    %20 = vector.shape_cast %19 : vector<128xf32> to vector<1x128xf32>
    %21 = vector.extract_strided_slice %2 {offsets = [6, 0], sizes = [1, 128], strides = [1, 1]} : vector<8x128xf32> to vector<1x128xf32>
    %22 = vector.shape_cast %21 : vector<1x128xf32> to vector<128xf32>
    %23 = vector.shape_cast %22 : vector<128xf32> to vector<1x128xf32>
    %24 = vector.extract_strided_slice %2 {offsets = [7, 0], sizes = [1, 128], strides = [1, 1]} : vector<8x128xf32> to vector<1x128xf32>
    %25 = vector.shape_cast %24 : vector<1x128xf32> to vector<128xf32>
    %26 = vector.shape_cast %25 : vector<128xf32> to vector<1x128xf32>
    %27 = vector.broadcast %5 : vector<1x128xf32> to vector<64x128xf32>
    %28 = arith.addf %1, %27 : vector<64x128xf32>
    %cst = arith.constant 1.000000e+00 : f32
    %29 = vector.broadcast %cst : f32 to vector<64x128xf32>
    %cst_4 = arith.constant 0.000000e+00 : f32
    %30 = vector.broadcast %cst_4 : f32 to vector<64x128xf32>
    %31 = arith.cmpf ogt, %28, %30 : vector<64x128xf32>
    %cst_5 = arith.constant 0.000000e+00 : f32
    %32 = vector.broadcast %cst_5 : f32 to vector<64x128xf32>
    %33 = arith.cmpf olt, %28, %32 : vector<64x128xf32>
    %cst_6 = arith.constant 0.000000e+00 : f32
    %34 = vector.broadcast %cst_6 : f32 to vector<64x128xf32>
    %35 = arith.subf %34, %29 : vector<64x128xf32>
    %cst_7 = arith.constant 0.000000e+00 : f32
    %36 = vector.broadcast %cst_7 : f32 to vector<64x128xf32>
    %37 = arith.select %33, %35, %36 : vector<64x128xi1>, vector<64x128xf32>
    %38 = arith.select %31, %29, %37 : vector<64x128xi1>, vector<64x128xf32>
    %39 = arith.truncf %38 : vector<64x128xf32> to vector<64x128xbf16>
    %40 = vector.shape_cast %39 : vector<64x128xbf16> to vector<4x16x128xbf16>
    %cst_8 = arith.constant 0.000000e+00 : bf16
    %41 = vector.broadcast %cst_8 : bf16 to vector<4x1x128xbf16>
    %42 = vector.extract_strided_slice %40 {offsets = [0, 0, 0], sizes = [4, 15, 128], strides = [1, 1, 1]} : vector<4x16x128xbf16> to vector<4x15x128xbf16>
    %43 = tpu.concatenate %41, %42 in 1 : vector<4x1x128xbf16>, vector<4x15x128xbf16> -> vector<4x16x128xbf16>
    %44 = vector.shape_cast %43 : vector<4x16x128xbf16> to vector<64x128xbf16>
    %45 = vector.extract_strided_slice %40 {offsets = [0, 1, 0], sizes = [4, 15, 128], strides = [1, 1, 1]} : vector<4x16x128xbf16> to vector<4x15x128xbf16>
    %46 = tpu.concatenate %45, %41 in 1 : vector<4x15x128xbf16>, vector<4x1x128xbf16> -> vector<4x16x128xbf16>
    %47 = vector.shape_cast %46 : vector<4x16x128xbf16> to vector<64x128xbf16>
    %48 = tpu.concatenate %44, %39, %47 in 1 : vector<64x128xbf16>, vector<64x128xbf16>, vector<64x128xbf16> -> vector<64x384xbf16>
    %c0_9 = arith.constant 0 : index
    %c0_10 = arith.constant 0 : index
    %49 = vector.load %arg2[%c0_9, %c0_10] : memref<384x128xbf16, #tpu.memory_space<vmem>>, vector<384x128xbf16>
    %cst_11 = arith.constant dense<0.000000e+00> : vector<64x128xf32>
    %50 = tpu.matmul %48, %49, %cst_11 {dimension_numbers = #tpu.dot_dimension_numbers<[1], [0], [0], [1], [0, 0, 1, 1], [], []>} : vector<64x384xbf16>, vector<384x128xbf16>, vector<64x128xf32> -> vector<64x128xf32>
    %51 = arith.addf %1, %50 : vector<64x128xf32>
    %52 = vector.broadcast %8 : vector<1x128xf32> to vector<64x128xf32>
    %53 = arith.addf %51, %52 : vector<64x128xf32>
    %cst_12 = arith.constant 0.000000e+00 : f32
    %54 = vector.broadcast %cst_12 : f32 to vector<64x128xf32>
    %55 = arith.cmpf oge, %53, %54 : vector<64x128xf32>
    %56 = vector.broadcast %23 : vector<1x128xf32> to vector<64x128xf32>
    %57 = arith.mulf %53, %56 : vector<64x128xf32>
    %58 = arith.select %55, %53, %57 : vector<64x128xi1>, vector<64x128xf32>
    %59 = vector.broadcast %11 : vector<1x128xf32> to vector<64x128xf32>
    %60 = arith.addf %58, %59 : vector<64x128xf32>
    %61 = vector.broadcast %14 : vector<1x128xf32> to vector<64x128xf32>
    %62 = arith.addf %60, %61 : vector<64x128xf32>
    %cst_13 = arith.constant 1.000000e+00 : f32
    %63 = vector.broadcast %cst_13 : f32 to vector<64x128xf32>
    %cst_14 = arith.constant 0.000000e+00 : f32
    %64 = vector.broadcast %cst_14 : f32 to vector<64x128xf32>
    %65 = arith.cmpf ogt, %62, %64 : vector<64x128xf32>
    %cst_15 = arith.constant 0.000000e+00 : f32
    %66 = vector.broadcast %cst_15 : f32 to vector<64x128xf32>
    %67 = arith.cmpf olt, %62, %66 : vector<64x128xf32>
    %cst_16 = arith.constant 0.000000e+00 : f32
    %68 = vector.broadcast %cst_16 : f32 to vector<64x128xf32>
    %69 = arith.subf %68, %63 : vector<64x128xf32>
    %cst_17 = arith.constant 0.000000e+00 : f32
    %70 = vector.broadcast %cst_17 : f32 to vector<64x128xf32>
    %71 = arith.select %67, %69, %70 : vector<64x128xi1>, vector<64x128xf32>
    %72 = arith.select %65, %63, %71 : vector<64x128xi1>, vector<64x128xf32>
    %73 = arith.truncf %72 : vector<64x128xf32> to vector<64x128xbf16>
    %74 = vector.shape_cast %73 : vector<64x128xbf16> to vector<4x16x128xbf16>
    %cst_18 = arith.constant 0.000000e+00 : bf16
    %75 = vector.broadcast %cst_18 : bf16 to vector<4x1x128xbf16>
    %76 = vector.extract_strided_slice %74 {offsets = [0, 0, 0], sizes = [4, 15, 128], strides = [1, 1, 1]} : vector<4x16x128xbf16> to vector<4x15x128xbf16>
    %77 = tpu.concatenate %75, %76 in 1 : vector<4x1x128xbf16>, vector<4x15x128xbf16> -> vector<4x16x128xbf16>
    %78 = vector.shape_cast %77 : vector<4x16x128xbf16> to vector<64x128xbf16>
    %79 = vector.extract_strided_slice %74 {offsets = [0, 1, 0], sizes = [4, 15, 128], strides = [1, 1, 1]} : vector<4x16x128xbf16> to vector<4x15x128xbf16>
    %80 = tpu.concatenate %79, %75 in 1 : vector<4x15x128xbf16>, vector<4x1x128xbf16> -> vector<4x16x128xbf16>
    %81 = vector.shape_cast %80 : vector<4x16x128xbf16> to vector<64x128xbf16>
    %82 = tpu.concatenate %78, %73, %81 in 1 : vector<64x128xbf16>, vector<64x128xbf16>, vector<64x128xbf16> -> vector<64x384xbf16>
    %c0_19 = arith.constant 0 : index
    %c0_20 = arith.constant 0 : index
    %83 = vector.load %arg3[%c0_19, %c0_20] : memref<384x128xbf16, #tpu.memory_space<vmem>>, vector<384x128xbf16>
    %cst_21 = arith.constant dense<0.000000e+00> : vector<64x128xf32>
    %84 = tpu.matmul %82, %83, %cst_21 {dimension_numbers = #tpu.dot_dimension_numbers<[1], [0], [0], [1], [0, 0, 1, 1], [], []>} : vector<64x384xbf16>, vector<384x128xbf16>, vector<64x128xf32> -> vector<64x128xf32>
    %85 = arith.addf %60, %84 : vector<64x128xf32>
    %86 = vector.broadcast %17 : vector<1x128xf32> to vector<64x128xf32>
    %87 = arith.addf %85, %86 : vector<64x128xf32>
    %cst_22 = arith.constant 0.000000e+00 : f32
    %88 = vector.broadcast %cst_22 : f32 to vector<64x128xf32>
    %89 = arith.cmpf oge, %87, %88 : vector<64x128xf32>
    %90 = vector.broadcast %26 : vector<1x128xf32> to vector<64x128xf32>
    %91 = arith.mulf %87, %90 : vector<64x128xf32>
    %92 = arith.select %89, %87, %91 : vector<64x128xi1>, vector<64x128xf32>
    %93 = vector.broadcast %20 : vector<1x128xf32> to vector<64x128xf32>
    %94 = arith.addf %92, %93 : vector<64x128xf32>
    %95 = vector.shape_cast %94 : vector<64x128xf32> to vector<4x16x128xf32>
    %c0_23 = arith.constant 0 : index
    %c0_24 = arith.constant 0 : index
    %c0_25 = arith.constant 0 : index
    %96 = vector.load %arg5[%c0_23, %c0_24, %c0_25] : memref<4x16x128xf32, #tpu.memory_space<vmem>>, vector<4x16x128xf32>
    tpu.vector_store %arg5[%c0_23, %c0_24, %c0_25], %95 {strides = array<i32>} : memref<4x16x128xf32, #tpu.memory_space<vmem>>, vector<4x16x128xf32>,
    return
  }
  func.func @transform_0(%arg0: i32) -> (i32, i32, i32) {
    %c0_i32 = arith.constant 0 : i32
    %c0_i32_0 = arith.constant 0 : i32
    %c0_i32_1 = arith.constant 0 : i32
    return %arg0, %c0_i32, %c0_i32_0 : i32, i32, i32
  }
  func.func @transform_1(%arg0: i32) -> (i32, i32) {
    %c0_i32 = arith.constant 0 : i32
    %c0_i32_0 = arith.constant 0 : i32
    %c0_i32_1 = arith.constant 0 : i32
    return %c0_i32, %c0_i32_0 : i32, i32
  }
  func.func @transform_2(%arg0: i32) -> (i32, i32) {
    %c0_i32 = arith.constant 0 : i32
    %c0_i32_0 = arith.constant 0 : i32
    %c0_i32_1 = arith.constant 0 : i32
    return %c0_i32, %c0_i32_0 : i32, i32
  }
  func.func @transform_3(%arg0: i32) -> (i32, i32) {
    %c0_i32 = arith.constant 0 : i32
    %c0_i32_0 = arith.constant 0 : i32
    %c0_i32_1 = arith.constant 0 : i32
    return %c0_i32, %c0_i32_0 : i32, i32
  }
  func.func @transform_4(%arg0: i32) -> (i32, i32, i32) {
    %c0_i32 = arith.constant 0 : i32
    %c0_i32_0 = arith.constant 0 : i32
    %c0_i32_1 = arith.constant 0 : i32
    return %arg0, %c0_i32, %c0_i32_0 : i32, i32, i32
  }
}

</mosaic_0001>

<llo_original>
// kernel: tpu_custom_call.1
$region0: #{tpu_custom_call.1}
  #allocation0 [shape = 'u32[]', space=smem, size = 0x4, offset = 0x4, fixed_abs, tag = 'smem constant byte address 0x4 - core index']
  #allocation1 [shape = 'u32[144,128]{1,0:T(1,128)}', space=vmem, size = 0x12000, scoped, tag = 'internal scratch']
  %s0 = inlined_call_operand.hbm [shape: f32[8,16,128], index: 0, kind: input, shape index: {}]
  %s1 = inlined_call_operand.hbm [shape: bf16[384,128], index: 1, kind: input, shape index: {}]
  %s2 = inlined_call_operand.hbm [shape: bf16[384,128], index: 2, kind: input, shape index: {}]
  %s3 = inlined_call_operand.vmem [shape: f32[8,128], index: 3, kind: input, shape index: {}]
  %s4 = inlined_call_operand.hbm [shape: f32[8,16,128], index: 4, kind: output, shape index: {}]
  %s5 = sld [smem:[#allocation0]]
  $region61: #{tpu_custom_call.1} parent=0
    _
  %s7 = ssub.s32 1, %s5
  %s8 = scalar_select 0, %s7, %s5
  $region1: #{tpu_custom_call.1} parent=0
    #allocation2 [shape = 'u8[65536]{0}', space=vmem, size = 0x10000, scoped, tag = 'input window, operand 0']
    #allocation3 [shape = 's32[2]{0}', space=sflag, size = 0x8, scoped, tag = 'scoped memory for tpu_custom_call.1']
    #allocation4 [shape = 's32[2]{0}', space=sflag, size = 0x8, scoped, tag = 'scoped memory for tpu_custom_call.1']
    #allocation5 [shape = 'u8[98304]{0}', space=vmem, size = 0x18000, scoped, tag = 'input window, operand 1, single buffered']
    #allocation6 [shape = 's32[1]{0}', space=sflag, size = 0x4, scoped, tag = 'scoped memory for tpu_custom_call.1']
    #allocation7 [shape = 'u8[98304]{0}', space=vmem, size = 0x18000, scoped, tag = 'input window, operand 2, single buffered']
    #allocation8 [shape = 'u8[65536]{0}', space=vmem, size = 0x10000, scoped, tag = 'output window, operand 0']
    %9 = vsyncpa [#allocation3], 0
    %s10 = scalar_lea.sflag [#allocation3], 1
    %11 = vsyncpa %s10, 0
    %12 = vsyncpa [#allocation6], 0
    %13 = vsyncpa [#allocation4], 0
    %s14 = scalar_lea.sflag [#allocation4], 1
    %15 = vsyncpa %s14, 0
    loop: start=0, step=1, limit=4
    $region2: #{tpu_custom_call.1} parent=1 // loop_pre_header
      _
    $region3: #{tpu_custom_call.1} parent=1 // loop_header
      %s17 = sphi 0, %s21
      %p18 = scmp.ge.s32.totalorder %s17, 4
      %s27 = sphi 0, %s29
      %s30 = sphi 0, %s27
      %s31 = sphi 0, %s30
      %s47 = sphi 0, %s31
      %s51 = sphi 0, %s51
      %s53 = sphi 0, %s51
      %s54 = sphi 0, %s53
      %s68 = sphi 0, %s54
      %s72 = sphi 0, %s72
      %s74 = sphi 0, %s72
      %s75 = sphi 0, %s74
      %s89 = sphi 0, %s75
      %s93 = sphi 0, %s93
      %s95 = sphi 0, %s93
      %s96 = sphi 0, %s95
      %s110 = sphi 0, %s96
      %s116 = sphi 0, %s118
      %s119 = sphi 0, %s116
      %s120 = sphi 0, %s119
      %s136 = sphi 0, %s120
    $region4: #{tpu_custom_call.1} parent=1 // loop_header_branch
      %20 = sbr.rel (%p18) target = $region8
    $region5: #{tpu_custom_call.1} parent=1 // loop_body
      %s22 = ssub.s32 %s17, 1
      %s23 = ssub.s32 %s17, 2
      %s24 = sadd.s32 %s17, 1
      %s25 = ssub.s32 %s17, %s24
      %p26 = scmp.eq.s32.totalorder %s25, 0
      %s28 = sadd.s32 %s27, 1
      %s29 = scalar_select %p26, %s27, %s28
      %p32 = pneg %p26
      %p33 = scmp.eq.s32.totalorder %s17, 1
      %p34 = por %p32, %p33
      %p35 = scmp.ne.s32.totalorder %s27, %s30
      %p36 = scmp.eq.s32.totalorder %s17, 0
      %p37 = por %p35, %p36
      %p38 = scmp.ne.s32.totalorder %s27, %s30
      %p39 = scmp.eq.s32.totalorder %s22, 1
      %p40 = por %p38, %p39
      %p41 = scmp.ne.s32.totalorder %s30, %s31
      %p42 = scmp.eq.s32.totalorder %s22, 0
      %p43 = por %p41, %p42
      %p44 = scmp.ne.s32.totalorder %s30, %s31
      %p45 = scmp.eq.s32.totalorder %s23, 1
      %p46 = por %p44, %p45
      %p48 = scmp.ne.s32.totalorder %s31, %s47
      %p49 = scmp.eq.s32.totalorder %s23, 0
      %p50 = por %p48, %p49
      %s52 = sadd.s32 %s51, 1
      %p55 = scmp.eq.s32.totalorder %s17, 1
      %p56 = scmp.ne.s32.totalorder %s51, %s53
      %p57 = scmp.eq.s32.totalorder %s17, 0
      %p58 = por %p56, %p57
      %p59 = scmp.ne.s32.totalorder %s51, %s53
      %p60 = scmp.eq.s32.totalorder %s22, 1
      %p61 = por %p59, %p60
      %p62 = scmp.ne.s32.totalorder %s53, %s54
      %p63 = scmp.eq.s32.totalorder %s22, 0
      %p64 = por %p62, %p63
      %p65 = scmp.ne.s32.totalorder %s53, %s54
      %p66 = scmp.eq.s32.totalorder %s23, 1
      %p67 = por %p65, %p66
      %p69 = scmp.ne.s32.totalorder %s54, %s68
      %p70 = scmp.eq.s32.totalorder %s23, 0
      %p71 = por %p69, %p70
      %s73 = sadd.s32 %s72, 1
      %p76 = scmp.eq.s32.totalorder %s17, 1
      %p77 = scmp.ne.s32.totalorder %s72, %s74
      %p78 = scmp.eq.s32.totalorder %s17, 0
      %p79 = por %p77, %p78
      %p80 = scmp.ne.s32.totalorder %s72, %s74
      %p81 = scmp.eq.s32.totalorder %s22, 1
      %p82 = por %p80, %p81
      %p83 = scmp.ne.s32.totalorder %s74, %s75
      %p84 = scmp.eq.s32.totalorder %s22, 0
      %p85 = por %p83, %p84
      %p86 = scmp.ne.s32.totalorder %s74, %s75
      %p87 = scmp.eq.s32.totalorder %s23, 1
      %p88 = por %p86, %p87
      %p90 = scmp.ne.s32.totalorder %s75, %s89
      %p91 = scmp.eq.s32.totalorder %s23, 0
      %p92 = por %p90, %p91
      %s94 = sadd.s32 %s93, 1
      %p97 = scmp.eq.s32.totalorder %s17, 1
      %p98 = scmp.ne.s32.totalorder %s93, %s95
      %p99 = scmp.eq.s32.totalorder %s17, 0
      %p100 = por %p98, %p99
      %p101 = scmp.ne.s32.totalorder %s93, %s95
      %p102 = scmp.eq.s32.totalorder %s22, 1
      %p103 = por %p101, %p102
      %p104 = scmp.ne.s32.totalorder %s95, %s96
      %p105 = scmp.eq.s32.totalorder %s22, 0
      %p106 = por %p104, %p105
      %p107 = scmp.ne.s32.totalorder %s95, %s96
      %p108 = scmp.eq.s32.totalorder %s23, 1
      %p109 = por %p107, %p108
      %p111 = scmp.ne.s32.totalorder %s96, %s110
      %p112 = scmp.eq.s32.totalorder %s23, 0
      %p113 = por %p111, %p112
      %s114 = ssub.s32 %s17, %s24
      %p115 = scmp.eq.s32.totalorder %s114, 0
      %s117 = sadd.s32 %s116, 1
      %s118 = scalar_select %p115, %s116, %s117
      %p121 = pneg %p115
      %p122 = scmp.eq.s32.totalorder %s17, 1
      %p123 = por %p121, %p122
      %p124 = scmp.ne.s32.totalorder %s116, %s119
      %p125 = scmp.eq.s32.totalorder %s17, 0
      %p126 = por %p124, %p125
      %p127 = scmp.ne.s32.totalorder %s116, %s119
      %p128 = scmp.eq.s32.totalorder %s22, 1
      %p129 = por %p127, %p128
      %p130 = scmp.ne.s32.totalorder %s119, %s120
      %p131 = scmp.eq.s32.totalorder %s22, 0
      %p132 = por %p130, %p131
      %p133 = scmp.ne.s32.totalorder %s119, %s120
      %p134 = scmp.eq.s32.totalorder %s23, 1
      %p135 = por %p133, %p134
      %p137 = scmp.ne.s32.totalorder %s120, %s136
      %p138 = scmp.eq.s32.totalorder %s23, 0
      %p139 = por %p137, %p138
      %p140 = scmp.le.s32.totalorder 1, %s17
      %p141 = scmp.lt.s32.totalorder %s17, 3
      %p142 = pnand %p140, %p141
      %p143 = pneg %p142
      // Predicated region
      $region9: #{tpu_custom_call.1} parent=5 // pred_check
        _
      $region10: #{tpu_custom_call.1} parent=5 // pred_check_branch
        %145 = sbr.rel (%p142) target = $region12
      $region11: #{tpu_custom_call.1} parent=5 // pred_region
        %s146 = ssub.s32 %s17, 1
        // Predicated region
        $region13: #{tpu_custom_call.1} parent=11 // pred_check
          %p147 = pneg %p64
        $region14: #{tpu_custom_call.1} parent=11 // pred_check_branch
          %149 = sbr.rel (%p147) target = $region16
        $region15: #{tpu_custom_call.1} parent=11 // pred_region
          %s151 = ssub.s32 3072, 3072
          %152 = vsyncadd [#allocation6], %s151
          %s153 = sshll.u32 [#allocation5], 4
          %s154 = int_to_ptr.vmem [resolvable:$true] %s153
          %159 = dma.hbm_to_vmem [thread:$0]  %s1, 3072, %s154, [#allocation6], 64, 64, 4
        $region16: #{tpu_custom_call.1} parent=11 // pred_fallthru
          _
        // Predicated region
        $region17: #{tpu_custom_call.1} parent=11 // pred_check
          %p160 = pneg %p85
        $region18: #{tpu_custom_call.1} parent=11 // pred_check_branch
          %162 = sbr.rel (%p160) target = $region20
        $region19: #{tpu_custom_call.1} parent=11 // pred_region
          %s164 = ssub.s32 3072, 3072
          %165 = vsyncadd [#allocation6], %s164
          %s166 = sshll.u32 [#allocation7], 4
          %s167 = int_to_ptr.vmem [resolvable:$true] %s166
          %172 = dma.hbm_to_vmem [thread:$0]  %s2, 3072, %s167, [#allocation6], 64, 64, 4
        $region20: #{tpu_custom_call.1} parent=11 // pred_fallthru
          _
        // Predicated region
        $region21: #{tpu_custom_call.1} parent=11 // pred_check
          %p173 = pneg %p106
        $region22: #{tpu_custom_call.1} parent=11 // pred_check_branch
          %175 = sbr.rel (%p173) target = $region24
        $region23: #{tpu_custom_call.1} parent=11 // pred_region
          _
        $region24: #{tpu_custom_call.1} parent=11 // pred_fallthru
          _
      $region12: #{tpu_custom_call.1} parent=5 // pred_fallthru
        _
      %p176 = scmp.lt.s32.totalorder %s17, 2
      // Predicated region
      $region25: #{tpu_custom_call.1} parent=5 // pred_check
        %p177 = pneg %p176
      $region26: #{tpu_custom_call.1} parent=5 // pred_check_branch
        %179 = sbr.rel (%p177) target = $region28
      $region27: #{tpu_custom_call.1} parent=5 // pred_region
        // Predicated region
        $region29: #{tpu_custom_call.1} parent=27 // pred_check
          %p180 = pneg %p37
        $region30: #{tpu_custom_call.1} parent=27 // pred_check_branch
          %182 = sbr.rel (%p180) target = $region32
        $region31: #{tpu_custom_call.1} parent=27 // pred_region
          %s183 = sand.u32 %s27, 1
          %s184 = scalar_lea.sflag [#allocation3], %s183
          %s185 = sand.u32 %s27, 1
          %s186 = smul.addr %s185, 64
          %s187 = scalar_lea.vmem [#allocation2], %s186
          %s188 = smul.u32 4, %s17
          %s190 = ssub.s32 1024, 1024
          %191 = vsyncadd %s184, %s190
          %s192 = smul.addr %s188, 2
          %s193 = smul.addr %s192, 128
          %s194 = scalar_lea.hbm %s0, %s193
          %s195 = sshll.u32 %s187, 4
          %s196 = int_to_ptr.vmem [resolvable:$true] %s195
          %201 = dma.hbm_to_vmem [thread:$0]  %s194, 1024, %s196, %s184, 128, 128, 8
        $region32: #{tpu_custom_call.1} parent=27 // pred_fallthru
          _
      $region28: #{tpu_custom_call.1} parent=5 // pred_fallthru
        _
      %p202 = scmp.le.s32.totalorder 1, %s17
      %p203 = scmp.lt.s32.totalorder %s17, 3
      %p204 = pnand %p202, %p203
      %p205 = pneg %p204
      // Predicated region
      $region33: #{tpu_custom_call.1} parent=5 // pred_check
        _
      $region34: #{tpu_custom_call.1} parent=5 // pred_check_branch
        %207 = sbr.rel (%p204) target = $region36
      $region35: #{tpu_custom_call.1} parent=5 // pred_region
        %s208 = ssub.s32 %s17, 1
        %s209 = sand.u32 %s30, 1
        %s210 = scalar_lea.sflag [#allocation3], %s209
        %s211 = sand.u32 %s30, 1
        %s212 = smul.addr %s211, 64
        %s213 = scalar_lea.vmem [#allocation2], %s212
        // Predicated region
        $region37: #{tpu_custom_call.1} parent=35 // pred_check
          %p214 = pneg %p43
        $region38: #{tpu_custom_call.1} parent=35 // pred_check_branch
          %216 = sbr.rel (%p214) target = $region40
        $region39: #{tpu_custom_call.1} parent=35 // pred_region
          %217 = dma.done %s210, 1024
        $region40: #{tpu_custom_call.1} parent=35 // pred_fallthru
          _
        // Predicated region
        $region41: #{tpu_custom_call.1} parent=35 // pred_check
          %p218 = pneg %p64
        $region42: #{tpu_custom_call.1} parent=35 // pred_check_branch
          %220 = sbr.rel (%p218) target = $region44
        $region43: #{tpu_custom_call.1} parent=35 // pred_region
          %221 = dma.done [#allocation6], 3072
        $region44: #{tpu_custom_call.1} parent=35 // pred_fallthru
          _
        // Predicated region
        $region45: #{tpu_custom_call.1} parent=35 // pred_check
          %p222 = pneg %p85
        $region46: #{tpu_custom_call.1} parent=35 // pred_check_branch
          %224 = sbr.rel (%p222) target = $region48
        $region47: #{tpu_custom_call.1} parent=35 // pred_region
          %225 = dma.done [#allocation6], 3072
        $region48: #{tpu_custom_call.1} parent=35 // pred_fallthru
          _
        %s226 = sand.u32 %s30, 1
        %s227 = scalar_lea.sflag [#allocation3], %s226
        %s228 = sand.u32 %s30, 1
        %s229 = smul.addr %s228, 64
        %s230 = scalar_lea.vmem [#allocation2], %s229
        %p231 = pneg %p43
        %p232 = pneg %p40
        %p233 = pneg %p64
        %p234 = pneg %p61
        %p235 = pneg %p85
        %p236 = pneg %p82
        %p237 = pneg %p106
        %p238 = pneg %p103
        %p239 = pneg %p132
        %p240 = pneg %p129
        %s241 = sand.u32 %s119, 1
        %s242 = scalar_lea.sflag [#allocation4], %s241
        %s243 = sand.u32 %s119, 1
        %s244 = smul.addr %s243, 64
        %s245 = scalar_lea.vmem [#allocation8], %s244
        %s246 = smul.u32 4, %s22
        %s247 = smul.u32 4, %s22
        %v249 = vld [vmem:[%s213] sm:$0xff]
        %v250 = vld [vmem:[%s213 + $0x8] sm:$0xff]
        %v251 = vld [vmem:[%s213 + $0x10] sm:$0xff]
        %v252 = vld [vmem:[%s213 + $0x18] sm:$0xff]
        %v253 = vld [vmem:[%s213 + $0x20] sm:$0xff]
        %v254 = vld [vmem:[%s213 + $0x28] sm:$0xff]
        %v255 = vld [vmem:[%s213 + $0x30] sm:$0xff]
        %v256 = vld [vmem:[%s213 + $0x38] sm:$0xff]
        %v257 = vld [vmem:[%s3] sm:$0xff]
        %v258 = vlaneseq
        %v259 = vshrl.u32 %v258, 7
        %v260 = vsub.s32 0, %v259
        %v261 = vrot.slane %v257, %v260
        %v262 = vadd.f32 %v249, %v261
        %v263 = vadd.f32 %v250, %v261
        %v264 = vadd.f32 %v251, %v261
        %v265 = vadd.f32 %v252, %v261
        %v266 = vadd.f32 %v253, %v261
        %v267 = vadd.f32 %v254, %v261
        %v268 = vadd.f32 %v255, %v261
        %v269 = vadd.f32 %v256, %v261
        %vm270 = vcmp.gt.f32.partialorder %v262, 0.0
        %vm271 = vcmp.gt.f32.partialorder %v263, 0.0
        %vm272 = vcmp.gt.f32.partialorder %v264, 0.0
        %vm273 = vcmp.gt.f32.partialorder %v265, 0.0
        %vm274 = vcmp.gt.f32.partialorder %v266, 0.0
        %vm275 = vcmp.gt.f32.partialorder %v267, 0.0
        %vm276 = vcmp.gt.f32.partialorder %v268, 0.0
        %vm277 = vcmp.gt.f32.partialorder %v269, 0.0
        %vm278 = vcmp.lt.f32.partialorder %v262, 0.0
        %vm279 = vcmp.lt.f32.partialorder %v263, 0.0
        %vm280 = vcmp.lt.f32.partialorder %v264, 0.0
        %vm281 = vcmp.lt.f32.partialorder %v265, 0.0
        %vm282 = vcmp.lt.f32.partialorder %v266, 0.0
        %vm283 = vcmp.lt.f32.partialorder %v267, 0.0
        %vm284 = vcmp.lt.f32.partialorder %v268, 0.0
        %vm285 = vcmp.lt.f32.partialorder %v269, 0.0
        %v286 = vsel %vm278, -1.0, 0.0
        %v287 = vsel %vm279, -1.0, 0.0
        %v288 = vsel %vm280, -1.0, 0.0
        %v289 = vsel %vm281, -1.0, 0.0
        %v290 = vsel %vm282, -1.0, 0.0
        %v291 = vsel %vm283, -1.0, 0.0
        %v292 = vsel %vm284, -1.0, 0.0
        %v293 = vsel %vm285, -1.0, 0.0
        %v294 = vsel %vm270, 1.0, %v286
        %v295 = vsel %vm271, 1.0, %v287
        %v296 = vsel %vm272, 1.0, %v288
        %v297 = vsel %vm273, 1.0, %v289
        %v298 = vsel %vm274, 1.0, %v290
        %v299 = vsel %vm275, 1.0, %v291
        %v300 = vsel %vm276, 1.0, %v292
        %v301 = vsel %vm277, 1.0, %v293
        %v302 = vpack.c.bf16 %v295, %v294
        %v303 = vpack.c.bf16 %v297, %v296
        %v304 = vpack.c.bf16 %v299, %v298
        %v305 = vpack.c.bf16 %v301, %v300
        %v307 = vshrl.u32 %v302, 16
        %v309 = vrot.slane %v307, 7
        %v310 = vshll.u32 %v302, 16
        %v312 = vor.u32 %v309, %v310
        %v314 = vshrl.u32 %v303, 16
        %v316 = vrot.slane %v314, 7
        %v317 = vshll.u32 %v303, 16
        %v319 = vor.u32 %v316, %v317
        %v321 = vshrl.u32 %v304, 16
        %v323 = vrot.slane %v321, 7
        %v324 = vshll.u32 %v304, 16
        %v326 = vor.u32 %v323, %v324
        %v328 = vshrl.u32 %v305, 16
        %v330 = vrot.slane %v328, 7
        %v331 = vshll.u32 %v305, 16
        %v333 = vor.u32 %v330, %v331
        %vm338 = vcmask 1040384
        %vm339 = vsmask.f32 256
        %vm340 = vmand %vm338, %vm339
        %v341 = vsel %vm340, 0, %v312
        %v342 = vsel %vm340, 0, %v319
        %v343 = vsel %vm340, 0, %v326
        %v344 = vsel %vm340, 0, %v333
        %v345 = vrot.slane %v310, 1
        %v346 = vor.u32 %v307, %v345
        %v347 = vrot.slane %v317, 1
        %v348 = vor.u32 %v314, %v347
        %v349 = vrot.slane %v324, 1
        %v350 = vor.u32 %v321, %v349
        %v351 = vrot.slane %v331, 1
        %v352 = vor.u32 %v328, %v351
        %vm357 = vcmask 1047552
        %vm358 = vsmask.f32 7424
        %vm359 = vmand %vm357, %vm358
        %v360 = vsel %vm359, %v346, 0
        %v361 = vsel %vm359, %v348, 0
        %v362 = vsel %vm359, %v350, 0
        %v363 = vsel %vm359, %v352, 0
        %v364 = vld [vmem:[#allocation5] sm:$0xf]
        %v365 = vld [vmem:[#allocation5 + $0x4] sm:$0xf]
        %v366 = vld [vmem:[#allocation5 + $0x8] sm:$0xf]
        %v367 = vld [vmem:[#allocation5 + $0xc] sm:$0xf]
        %v368 = vld [vmem:[#allocation5 + $0x10] sm:$0xf]
        %v369 = vld [vmem:[#allocation5 + $0x14] sm:$0xf]
        %v370 = vld [vmem:[#allocation5 + $0x18] sm:$0xf]
        %v371 = vld [vmem:[#allocation5 + $0x1c] sm:$0xf]
        %v372 = vld [vmem:[#allocation5 + $0x20] sm:$0xf]
        %v373 = vld [vmem:[#allocation5 + $0x24] sm:$0xf]
        %v374 = vld [vmem:[#allocation5 + $0x28] sm:$0xf]
        %v375 = vld [vmem:[#allocation5 + $0x2c] sm:$0xf]
        %v376 = vld [vmem:[#allocation5 + $0x30] sm:$0xf]
        %v377 = vld [vmem:[#allocation5 + $0x34] sm:$0xf]
        %v378 = vld [vmem:[#allocation5 + $0x38] sm:$0xf]
        %v379 = vld [vmem:[#allocation5 + $0x3c] sm:$0xf]
        %v380 = vld [vmem:[#allocation5 + $0x40] sm:$0xf]
        %v381 = vld [vmem:[#allocation5 + $0x44] sm:$0xf]
        %v382 = vld [vmem:[#allocation5 + $0x48] sm:$0xf]
        %v383 = vld [vmem:[#allocation5 + $0x4c] sm:$0xf]
        %v384 = vld [vmem:[#allocation5 + $0x50] sm:$0xf]
        %v385 = vld [vmem:[#allocation5 + $0x54] sm:$0xf]
        %v386 = vld [vmem:[#allocation5 + $0x58] sm:$0xf]
        %v387 = vld [vmem:[#allocation5 + $0x5c] sm:$0xf]
        %v388 = vld [vmem:[#allocation5 + $0x60] sm:$0xf]
        %v389 = vld [vmem:[#allocation5 + $0x64] sm:$0xf]
        %v390 = vld [vmem:[#allocation5 + $0x68] sm:$0xf]
        %v391 = vld [vmem:[#allocation5 + $0x6c] sm:$0xf]
        %v392 = vld [vmem:[#allocation5 + $0x70] sm:$0xf]
        %v393 = vld [vmem:[#allocation5 + $0x74] sm:$0xf]
        %v394 = vld [vmem:[#allocation5 + $0x78] sm:$0xf]
        %v395 = vld [vmem:[#allocation5 + $0x7c] sm:$0xf]
        %v396 = vld [vmem:[#allocation5 + $0x80] sm:$0xf]
        %v397 = vld [vmem:[#allocation5 + $0x84] sm:$0xf]
        %v398 = vld [vmem:[#allocation5 + $0x88] sm:$0xf]
        %v399 = vld [vmem:[#allocation5 + $0x8c] sm:$0xf]
        %v400 = vld [vmem:[#allocation5 + $0x90] sm:$0xf]
        %v401 = vld [vmem:[#allocation5 + $0x94] sm:$0xf]
        %v402 = vld [vmem:[#allocation5 + $0x98] sm:$0xf]
        %v403 = vld [vmem:[#allocation5 + $0x9c] sm:$0xf]
        %v404 = vld [vmem:[#allocation5 + $0xa0] sm:$0xf]
        %v405 = vld [vmem:[#allocation5 + $0xa4] sm:$0xf]
        %v406 = vld [vmem:[#allocation5 + $0xa8] sm:$0xf]
        %v407 = vld [vmem:[#allocation5 + $0xac] sm:$0xf]
        %v408 = vld [vmem:[#allocation5 + $0xb0] sm:$0xf]
        %v409 = vld [vmem:[#allocation5 + $0xb4] sm:$0xf]
        %v410 = vld [vmem:[#allocation5 + $0xb8] sm:$0xf]
        %v411 = vld [vmem:[#allocation5 + $0xbc] sm:$0xf]
        %v460 = vunpack.c.l.b16 %v364
        %v461 = vunpack.c.l.b16 %v365
        %v462 = vunpack.c.l.b16 %v366
        %v463 = vunpack.c.l.b16 %v367
        %v464 = vunpack.c.l.b16 %v368
        %v465 = vunpack.c.l.b16 %v369
        %v466 = vunpack.c.l.b16 %v370
        %v467 = vunpack.c.l.b16 %v371
        %v468 = vunpack.c.l.b16 %v372
        %v469 = vunpack.c.l.b16 %v373
        %v470 = vunpack.c.l.b16 %v374
        %v471 = vunpack.c.l.b16 %v375
        %v472 = vunpack.c.l.b16 %v376
        %v473 = vunpack.c.l.b16 %v377
        %v474 = vunpack.c.l.b16 %v378
        %v475 = vunpack.c.l.b16 %v379
        %v476 = vunpack.c.l.b16 %v380
        %v477 = vunpack.c.l.b16 %v381
        %v478 = vunpack.c.l.b16 %v382
        %v479 = vunpack.c.l.b16 %v383
        %v480 = vunpack.c.l.b16 %v384
        %v481 = vunpack.c.l.b16 %v385
        %v482 = vunpack.c.l.b16 %v386
        %v483 = vunpack.c.l.b16 %v387
        %v484 = vunpack.c.l.b16 %v388
        %v485 = vunpack.c.l.b16 %v389
        %v486 = vunpack.c.l.b16 %v390
        %v487 = vunpack.c.l.b16 %v391
        %v488 = vunpack.c.l.b16 %v392
        %v489 = vunpack.c.l.b16 %v393
        %v490 = vunpack.c.l.b16 %v394
        %v491 = vunpack.c.l.b16 %v395
        %v492 = vunpack.c.l.b16 %v396
        %v493 = vunpack.c.l.b16 %v397
        %v494 = vunpack.c.l.b16 %v398
        %v495 = vunpack.c.l.b16 %v399
        %v496 = vunpack.c.l.b16 %v400
        %v497 = vunpack.c.l.b16 %v401
        %v498 = vunpack.c.l.b16 %v402
        %v499 = vunpack.c.l.b16 %v403
        %v500 = vunpack.c.l.b16 %v404
        %v501 = vunpack.c.l.b16 %v405
        %v502 = vunpack.c.l.b16 %v406
        %v503 = vunpack.c.l.b16 %v407
        %v504 = vunpack.c.l.b16 %v408
        %v505 = vunpack.c.l.b16 %v409
        %v506 = vunpack.c.l.b16 %v410
        %v507 = vunpack.c.l.b16 %v411
        %v508 = vpack.c.b16 %v461, %v460
        %v509 = vpack.c.b16 %v463, %v462
        %v510 = vpack.c.b16 %v465, %v464
        %v511 = vpack.c.b16 %v467, %v466
        %v512 = vpack.c.b16 %v469, %v468
        %v513 = vpack.c.b16 %v471, %v470
        %v514 = vpack.c.b16 %v473, %v472
        %v515 = vpack.c.b16 %v475, %v474
        %v516 = vpack.c.b16 %v477, %v476
        %v517 = vpack.c.b16 %v479, %v478
        %v518 = vpack.c.b16 %v481, %v480
        %v519 = vpack.c.b16 %v483, %v482
        %v520 = vpack.c.b16 %v485, %v484
        %v521 = vpack.c.b16 %v487, %v486
        %v522 = vpack.c.b16 %v489, %v488
        %v523 = vpack.c.b16 %v491, %v490
        %v524 = vpack.c.b16 %v493, %v492
        %v525 = vpack.c.b16 %v495, %v494
        %v526 = vpack.c.b16 %v497, %v496
        %v527 = vpack.c.b16 %v499, %v498
        %v528 = vpack.c.b16 %v501, %v500
        %v529 = vpack.c.b16 %v503, %v502
        %v530 = vpack.c.b16 %v505, %v504
        %v531 = vpack.c.b16 %v507, %v506
        %556 = vmatprep.subr.bf16.mxu0 0
        %557 = vmatpush1.bf16.msra.mxu0 %v508
        %558 = vmatprep.subr.bf16.mxu0 0
        %559 = vmatpush1.bf16.msra.mxu0 %v509
        %560 = vmatprep.subr.bf16.mxu0 0
        %561 = vmatpush1.bf16.msra.mxu0 %v510
        %562 = vmatprep.subr.bf16.mxu0 0
        %563 = vmatpush1.bf16.msra.mxu0 %v511
        %564 = vmatprep.subr.bf16.mxu0 0
        %565 = vmatpush1.bf16.msra.mxu0 %v512
        %566 = vmatprep.subr.bf16.mxu0 0
        %567 = vmatpush1.bf16.msra.mxu0 %v513
        %568 = vmatprep.subr.bf16.mxu0 0
        %569 = vmatpush1.bf16.msra.mxu0 %v514
        %570 = vmatprep.subr.bf16.mxu0 0
        %571 = vmatpush1.bf16.msra.mxu0 %v515
        %572 = vmatprep.subr.bf16.mxu0 0
        %573 = vmatpush1.bf16.msra.mxu0 %v516
        %574 = vmatprep.subr.bf16.mxu0 0
        %575 = vmatpush1.bf16.msra.mxu0 %v517
        %576 = vmatprep.subr.bf16.mxu0 0
        %577 = vmatpush1.bf16.msra.mxu0 %v518
        %578 = vmatprep.subr.bf16.mxu0 0
        %579 = vmatpush1.bf16.msra.mxu0 %v519
        %580 = vmatprep.subr.bf16.mxu0 0
        %581 = vmatpush1.bf16.msra.mxu0 %v520
        %582 = vmatprep.subr.bf16.mxu0 0
        %583 = vmatpush1.bf16.msra.mxu0 %v521
        %584 = vmatprep.subr.bf16.mxu0 0
        %585 = vmatpush1.bf16.msra.mxu0 %v522
        %586 = vmatprep.subr.bf16.mxu0 0
        %587 = vmatpush1.bf16.msra.mxu0 %v523
        %588 = vmatprep.mubr.bf16.mxu0 %v302
        %589 = vmatmul.mubr.bf16.gmra.mrb[0].mxu0 %v341
        %v590 = vpop.f32.mrb[0].mxu0
        %v591 = vadd.f32 0.0, %v590
        %v592 = vpop.f32.mrb[0].mxu0
        %v593 = vpop.f32.mrb[0].mxu0
        %v594 = vadd.f32 0.0, %v593
        %v595 = vpop.f32.mrb[0].mxu0
        %596 = vmatprep.mubr.bf16.mxu0 %v303
        %597 = vmatmul.mubr.bf16.gmra.mrb[0].mxu0 %v342
        %v598 = vpop.f32.mrb[0].mxu0
        %v599 = vadd.f32 0.0, %v598
        %v600 = vpop.f32.mrb[0].mxu0
        %v601 = vpop.f32.mrb[0].mxu0
        %v602 = vadd.f32 0.0, %v601
        %v603 = vpop.f32.mrb[0].mxu0
        %604 = vmatprep.mubr.bf16.mxu0 %v304
        %605 = vmatmul.mubr.bf16.gmra.mrb[0].mxu0 %v343
        %v606 = vpop.f32.mrb[0].mxu0
        %v607 = vadd.f32 0.0, %v606
        %v608 = vpop.f32.mrb[0].mxu0
        %v609 = vpop.f32.mrb[0].mxu0
        %v610 = vadd.f32 0.0, %v609
        %v611 = vpop.f32.mrb[0].mxu0
        %612 = vmatprep.mubr.bf16.mxu0 %v305
        %613 = vmatmul.mubr.bf16.gmra.mrb[0].mxu0 %v344
        %v614 = vpop.f32.mrb[0].mxu0
        %v615 = vadd.f32 0.0, %v614
        %v616 = vpop.f32.mrb[0].mxu0
        %v617 = vpop.f32.mrb[0].mxu0
        %v618 = vadd.f32 0.0, %v617
        %v619 = vpop.f32.mrb[0].mxu0
        %620 = vdwg.mxu0
        %621 = vmatprep.subr.bf16.mxu0 0
        %622 = vmatpush1.bf16.msra.mxu0 %v524
        %623 = vmatprep.subr.bf16.mxu0 0
        %624 = vmatpush1.bf16.msra.mxu0 %v525
        %625 = vmatprep.subr.bf16.mxu0 0
        %626 = vmatpush1.bf16.msra.mxu0 %v526
        %627 = vmatprep.subr.bf16.mxu0 0
        %628 = vmatpush1.bf16.msra.mxu0 %v527
        %629 = vmatprep.subr.bf16.mxu0 0
        %630 = vmatpush1.bf16.msra.mxu0 %v528
        %631 = vmatprep.subr.bf16.mxu0 0
        %632 = vmatpush1.bf16.msra.mxu0 %v529
        %633 = vmatprep.subr.bf16.mxu0 0
        %634 = vmatpush1.bf16.msra.mxu0 %v530
        %635 = vmatprep.subr.bf16.mxu0 0
        %636 = vmatpush1.bf16.msra.mxu0 %v531
        %637 = vmatprep.subr.bf16.mxu0 0
        %638 = vmatpush1.bf16.msra.mxu0 0
        %639 = vmatprep.subr.bf16.mxu0 0
        %640 = vmatpush1.bf16.msra.mxu0 0
        %641 = vmatprep.subr.bf16.mxu0 0
        %642 = vmatpush1.bf16.msra.mxu0 0
        %643 = vmatprep.subr.bf16.mxu0 0
        %644 = vmatpush1.bf16.msra.mxu0 0
        %645 = vmatprep.subr.bf16.mxu0 0
        %646 = vmatpush1.bf16.msra.mxu0 0
        %647 = vmatprep.subr.bf16.mxu0 0
        %648 = vmatpush1.bf16.msra.mxu0 0
        %649 = vmatprep.subr.bf16.mxu0 0
        %650 = vmatpush1.bf16.msra.mxu0 0
        %651 = vmatprep.subr.bf16.mxu0 0
        %652 = vmatpush1.bf16.msra.mxu0 0
        %653 = vmatprep.mubr.bf16.mxu0 0
        %654 = vmatmul.mubr.bf16.gmra.mrb[0].mxu0 %v360
        %v655 = vpop.f32.mrb[0].mxu0
        %v656 = vadd.f32 %v591, %v655
        %v657 = vpop.f32.mrb[0].mxu0
        %v658 = vpop.f32.mrb[0].mxu0
        %v659 = vadd.f32 %v594, %v658
        %v660 = vpop.f32.mrb[0].mxu0
        %661 = vmatprep.mubr.bf16.mxu0 0
        %662 = vmatmul.mubr.bf16.gmra.mrb[0].mxu0 %v361
        %v663 = vpop.f32.mrb[0].mxu0
        %v664 = vadd.f32 %v599, %v663
        %v665 = vpop.f32.mrb[0].mxu0
        %v666 = vpop.f32.mrb[0].mxu0
        %v667 = vadd.f32 %v602, %v666
        %v668 = vpop.f32.mrb[0].mxu0
        %669 = vmatprep.mubr.bf16.mxu0 0
        %670 = vmatmul.mubr.bf16.gmra.mrb[0].mxu0 %v362
        %v671 = vpop.f32.mrb[0].mxu0
        %v672 = vadd.f32 %v607, %v671
        %v673 = vpop.f32.mrb[0].mxu0
        %v674 = vpop.f32.mrb[0].mxu0
        %v675 = vadd.f32 %v610, %v674
        %v676 = vpop.f32.mrb[0].mxu0
        %677 = vmatprep.mubr.bf16.mxu0 0
        %678 = vmatmul.mubr.bf16.gmra.mrb[0].mxu0 %v363
        %v679 = vpop.f32.mrb[0].mxu0
        %v680 = vadd.f32 %v615, %v679
        %v681 = vpop.f32.mrb[0].mxu0
        %v682 = vpop.f32.mrb[0].mxu0
        %v683 = vadd.f32 %v618, %v682
        %v684 = vpop.f32.mrb[0].mxu0
        %685 = vdwg.mxu0
        %v686 = vadd.f32 %v249, %v656
        %v687 = vadd.f32 %v250, %v659
        %v688 = vadd.f32 %v251, %v664
        %v689 = vadd.f32 %v252, %v667
        %v690 = vadd.f32 %v253, %v672
        %v691 = vadd.f32 %v254, %v675
        %v692 = vadd.f32 %v255, %v680
        %v693 = vadd.f32 %v256, %v683
        %v694 = vlaneseq
        %v695 = vshrl.u32 %v694, 7
        %v696 = vsub.s32 1, %v695
        %v697 = vrot.slane %v257, %v696
        %v698 = vadd.f32 %v686, %v697
        %v699 = vadd.f32 %v687, %v697
        %v700 = vadd.f32 %v688, %v697
        %v701 = vadd.f32 %v689, %v697
        %v702 = vadd.f32 %v690, %v697
        %v703 = vadd.f32 %v691, %v697
        %v704 = vadd.f32 %v692, %v697
        %v705 = vadd.f32 %v693, %v697
        %vm706 = vcmp.ge.f32.partialorder %v698, 0.0
        %vm707 = vcmp.ge.f32.partialorder %v699, 0.0
        %vm708 = vcmp.ge.f32.partialorder %v700, 0.0
        %vm709 = vcmp.ge.f32.partialorder %v701, 0.0
        %vm710 = vcmp.ge.f32.partialorder %v702, 0.0
        %vm711 = vcmp.ge.f32.partialorder %v703, 0.0
        %vm712 = vcmp.ge.f32.partialorder %v704, 0.0
        %vm713 = vcmp.ge.f32.partialorder %v705, 0.0
        %v714 = vlaneseq
        %v715 = vshrl.u32 %v714, 7
        %v716 = vsub.s32 6, %v715
        %v717 = vrot.slane %v257, %v716
        %v718 = vmul.f32 %v698, %v717
        %v719 = vmul.f32 %v699, %v717
        %v720 = vmul.f32 %v700, %v717
        %v721 = vmul.f32 %v701, %v717
        %v722 = vmul.f32 %v702, %v717
        %v723 = vmul.f32 %v703, %v717
        %v724 = vmul.f32 %v704, %v717
        %v725 = vmul.f32 %v705, %v717
        %v726 = vsel %vm706, %v698, %v718
        %v727 = vsel %vm707, %v699, %v719
        %v728 = vsel %vm708, %v700, %v720
        %v729 = vsel %vm709, %v701, %v721
        %v730 = vsel %vm710, %v702, %v722
        %v731 = vsel %vm711, %v703, %v723
        %v732 = vsel %vm712, %v704, %v724
        %v733 = vsel %vm713, %v705, %v725
        %v734 = vlaneseq
        %v735 = vshrl.u32 %v734, 7
        %v736 = vsub.s32 2, %v735
        %v737 = vrot.slane %v257, %v736
        %v738 = vadd.f32 %v726, %v737
        %v739 = vadd.f32 %v727, %v737
        %v740 = vadd.f32 %v728, %v737
        %v741 = vadd.f32 %v729, %v737
        %v742 = vadd.f32 %v730, %v737
        %v743 = vadd.f32 %v731, %v737
        %v744 = vadd.f32 %v732, %v737
        %v745 = vadd.f32 %v733, %v737
        %v746 = vlaneseq
        %v747 = vshrl.u32 %v746, 7
        %v748 = vsub.s32 3, %v747
        %v749 = vrot.slane %v257, %v748
        %v750 = vadd.f32 %v738, %v749
        %v751 = vadd.f32 %v739, %v749
        %v752 = vadd.f32 %v740, %v749
        %v753 = vadd.f32 %v741, %v749
        %v754 = vadd.f32 %v742, %v749
        %v755 = vadd.f32 %v743, %v749
        %v756 = vadd.f32 %v744, %v749
        %v757 = vadd.f32 %v745, %v749
        %vm758 = vcmp.gt.f32.partialorder %v750, 0.0
        %vm759 = vcmp.gt.f32.partialorder %v751, 0.0
        %vm760 = vcmp.gt.f32.partialorder %v752, 0.0
        %vm761 = vcmp.gt.f32.partialorder %v753, 0.0
        %vm762 = vcmp.gt.f32.partialorder %v754, 0.0
        %vm763 = vcmp.gt.f32.partialorder %v755, 0.0
        %vm764 = vcmp.gt.f32.partialorder %v756, 0.0
        %vm765 = vcmp.gt.f32.partialorder %v757, 0.0
        %vm766 = vcmp.lt.f32.partialorder %v750, 0.0
        %vm767 = vcmp.lt.f32.partialorder %v751, 0.0
        %vm768 = vcmp.lt.f32.partialorder %v752, 0.0
        %vm769 = vcmp.lt.f32.partialorder %v753, 0.0
        %vm770 = vcmp.lt.f32.partialorder %v754, 0.0
        %vm771 = vcmp.lt.f32.partialorder %v755, 0.0
        %vm772 = vcmp.lt.f32.partialorder %v756, 0.0
        %vm773 = vcmp.lt.f32.partialorder %v757, 0.0
        %v774 = vsel %vm766, -1.0, 0.0
        %v775 = vsel %vm767, -1.0, 0.0
        %v776 = vsel %vm768, -1.0, 0.0
        %v777 = vsel %vm769, -1.0, 0.0
        %v778 = vsel %vm770, -1.0, 0.0
        %v779 = vsel %vm771, -1.0, 0.0
        %v780 = vsel %vm772, -1.0, 0.0
        %v781 = vsel %vm773, -1.0, 0.0
        %v782 = vsel %vm758, 1.0, %v774
        %v783 = vsel %vm759, 1.0, %v775
        %v784 = vsel %vm760, 1.0, %v776
        %v785 = vsel %vm761, 1.0, %v777
        %v786 = vsel %vm762, 1.0, %v778
        %v787 = vsel %vm763, 1.0, %v779
        %v788 = vsel %vm764, 1.0, %v780
        %v789 = vsel %vm765, 1.0, %v781
        %v790 = vpack.c.bf16 %v783, %v782
        %v791 = vpack.c.bf16 %v785, %v784
        %v792 = vpack.c.bf16 %v787, %v786
        %v793 = vpack.c.bf16 %v789, %v788
        %v795 = vshrl.u32 %v790, 16
        %v797 = vrot.slane %v795, 7
        %v798 = vshll.u32 %v790, 16
        %v800 = vor.u32 %v797, %v798
        %v802 = vshrl.u32 %v791, 16
        %v804 = vrot.slane %v802, 7
        %v805 = vshll.u32 %v791, 16
        %v807 = vor.u32 %v804, %v805
        %v809 = vshrl.u32 %v792, 16
        %v811 = vrot.slane %v809, 7
        %v812 = vshll.u32 %v792, 16
        %v814 = vor.u32 %v811, %v812
        %v816 = vshrl.u32 %v793, 16
        %v818 = vrot.slane %v816, 7
        %v819 = vshll.u32 %v793, 16
        %v821 = vor.u32 %v818, %v819
        %v826 = vsel %vm340, 0, %v800
        %v827 = vsel %vm340, 0, %v807
        %v828 = vsel %vm340, 0, %v814
        %v829 = vsel %vm340, 0, %v821
        %v830 = vrot.slane %v798, 1
        %v831 = vor.u32 %v795, %v830
        %v832 = vrot.slane %v805, 1
        %v833 = vor.u32 %v802, %v832
        %v834 = vrot.slane %v812, 1
        %v835 = vor.u32 %v809, %v834
        %v836 = vrot.slane %v819, 1
        %v837 = vor.u32 %v816, %v836
        %v842 = vsel %vm359, %v831, 0
        %v843 = vsel %vm359, %v833, 0
        %v844 = vsel %vm359, %v835, 0
        %v845 = vsel %vm359, %v837, 0
        %v846 = vld [vmem:[#allocation7] sm:$0xf]
        %v847 = vld [vmem:[#allocation7 + $0x4] sm:$0xf]
        %v848 = vld [vmem:[#allocation7 + $0x8] sm:$0xf]
        %v849 = vld [vmem:[#allocation7 + $0xc] sm:$0xf]
        %v850 = vld [vmem:[#allocation7 + $0x10] sm:$0xf]
        %v851 = vld [vmem:[#allocation7 + $0x14] sm:$0xf]
        %v852 = vld [vmem:[#allocation7 + $0x18] sm:$0xf]
        %v853 = vld [vmem:[#allocation7 + $0x1c] sm:$0xf]
        %v854 = vld [vmem:[#allocation7 + $0x20] sm:$0xf]
        %v855 = vld [vmem:[#allocation7 + $0x24] sm:$0xf]
        %v856 = vld [vmem:[#allocation7 + $0x28] sm:$0xf]
        %v857 = vld [vmem:[#allocation7 + $0x2c] sm:$0xf]
        %v858 = vld [vmem:[#allocation7 + $0x30] sm:$0xf]
        %v859 = vld [vmem:[#allocation7 + $0x34] sm:$0xf]
        %v860 = vld [vmem:[#allocation7 + $0x38] sm:$0xf]
        %v861 = vld [vmem:[#allocation7 + $0x3c] sm:$0xf]
        %v862 = vld [vmem:[#allocation7 + $0x40] sm:$0xf]
        %v863 = vld [vmem:[#allocation7 + $0x44] sm:$0xf]
        %v864 = vld [vmem:[#allocation7 + $0x48] sm:$0xf]
        %v865 = vld [vmem:[#allocation7 + $0x4c] sm:$0xf]
        %v866 = vld [vmem:[#allocation7 + $0x50] sm:$0xf]
        %v867 = vld [vmem:[#allocation7 + $0x54] sm:$0xf]
        %v868 = vld [vmem:[#allocation7 + $0x58] sm:$0xf]
        %v869 = vld [vmem:[#allocation7 + $0x5c] sm:$0xf]
        %v870 = vld [vmem:[#allocation7 + $0x60] sm:$0xf]
        %v871 = vld [vmem:[#allocation7 + $0x64] sm:$0xf]
        %v872 = vld [vmem:[#allocation7 + $0x68] sm:$0xf]
        %v873 = vld [vmem:[#allocation7 + $0x6c] sm:$0xf]
        %v874 = vld [vmem:[#allocation7 + $0x70] sm:$0xf]
        %v875 = vld [vmem:[#allocation7 + $0x74] sm:$0xf]
        %v876 = vld [vmem:[#allocation7 + $0x78] sm:$0xf]
        %v877 = vld [vmem:[#allocation7 + $0x7c] sm:$0xf]
        %v878 = vld [vmem:[#allocation7 + $0x80] sm:$0xf]
        %v879 = vld [vmem:[#allocation7 + $0x84] sm:$0xf]
        %v880 = vld [vmem:[#allocation7 + $0x88] sm:$0xf]
        %v881 = vld [vmem:[#allocation7 + $0x8c] sm:$0xf]
        %v882 = vld [vmem:[#allocation7 + $0x90] sm:$0xf]
        %v883 = vld [vmem:[#allocation7 + $0x94] sm:$0xf]
        %v884 = vld [vmem:[#allocation7 + $0x98] sm:$0xf]
        %v885 = vld [vmem:[#allocation7 + $0x9c] sm:$0xf]
        %v886 = vld [vmem:[#allocation7 + $0xa0] sm:$0xf]
        %v887 = vld [vmem:[#allocation7 + $0xa4] sm:$0xf]
        %v888 = vld [vmem:[#allocation7 + $0xa8] sm:$0xf]
        %v889 = vld [vmem:[#allocation7 + $0xac] sm:$0xf]
        %v890 = vld [vmem:[#allocation7 + $0xb0] sm:$0xf]
        %v891 = vld [vmem:[#allocation7 + $0xb4] sm:$0xf]
        %v892 = vld [vmem:[#allocation7 + $0xb8] sm:$0xf]
        %v893 = vld [vmem:[#allocation7 + $0xbc] sm:$0xf]
        %v942 = vunpack.c.l.b16 %v846
        %v943 = vunpack.c.l.b16 %v847
        %v944 = vunpack.c.l.b16 %v848
        %v945 = vunpack.c.l.b16 %v849
        %v946 = vunpack.c.l.b16 %v850
        %v947 = vunpack.c.l.b16 %v851
        %v948 = vunpack.c.l.b16 %v852
        %v949 = vunpack.c.l.b16 %v853
        %v950 = vunpack.c.l.b16 %v854
        %v951 = vunpack.c.l.b16 %v855
        %v952 = vunpack.c.l.b16 %v856
        %v953 = vunpack.c.l.b16 %v857
        %v954 = vunpack.c.l.b16 %v858
        %v955 = vunpack.c.l.b16 %v859
        %v956 = vunpack.c.l.b16 %v860
        %v957 = vunpack.c.l.b16 %v861
        %v958 = vunpack.c.l.b16 %v862
        %v959 = vunpack.c.l.b16 %v863
        %v960 = vunpack.c.l.b16 %v864
        %v961 = vunpack.c.l.b16 %v865
        %v962 = vunpack.c.l.b16 %v866
        %v963 = vunpack.c.l.b16 %v867
        %v964 = vunpack.c.l.b16 %v868
        %v965 = vunpack.c.l.b16 %v869
        %v966 = vunpack.c.l.b16 %v870
        %v967 = vunpack.c.l.b16 %v871
        %v968 = vunpack.c.l.b16 %v872
        %v969 = vunpack.c.l.b16 %v873
        %v970 = vunpack.c.l.b16 %v874
        %v971 = vunpack.c.l.b16 %v875
        %v972 = vunpack.c.l.b16 %v876
        %v973 = vunpack.c.l.b16 %v877
        %v974 = vunpack.c.l.b16 %v878
        %v975 = vunpack.c.l.b16 %v879
        %v976 = vunpack.c.l.b16 %v880
        %v977 = vunpack.c.l.b16 %v881
        %v978 = vunpack.c.l.b16 %v882
        %v979 = vunpack.c.l.b16 %v883
        %v980 = vunpack.c.l.b16 %v884
        %v981 = vunpack.c.l.b16 %v885
        %v982 = vunpack.c.l.b16 %v886
        %v983 = vunpack.c.l.b16 %v887
        %v984 = vunpack.c.l.b16 %v888
        %v985 = vunpack.c.l.b16 %v889
        %v986 = vunpack.c.l.b16 %v890
        %v987 = vunpack.c.l.b16 %v891
        %v988 = vunpack.c.l.b16 %v892
        %v989 = vunpack.c.l.b16 %v893
        %v990 = vpack.c.b16 %v943, %v942
        %v991 = vpack.c.b16 %v945, %v944
        %v992 = vpack.c.b16 %v947, %v946
        %v993 = vpack.c.b16 %v949, %v948
        %v994 = vpack.c.b16 %v951, %v950
        %v995 = vpack.c.b16 %v953, %v952
        %v996 = vpack.c.b16 %v955, %v954
        %v997 = vpack.c.b16 %v957, %v956
        %v998 = vpack.c.b16 %v959, %v958
        %v999 = vpack.c.b16 %v961, %v960
        %v1000 = vpack.c.b16 %v963, %v962
        %v1001 = vpack.c.b16 %v965, %v964
        %v1002 = vpack.c.b16 %v967, %v966
        %v1003 = vpack.c.b16 %v969, %v968
        %v1004 = vpack.c.b16 %v971, %v970
        %v1005 = vpack.c.b16 %v973, %v972
        %v1006 = vpack.c.b16 %v975, %v974
        %v1007 = vpack.c.b16 %v977, %v976
        %v1008 = vpack.c.b16 %v979, %v978
        %v1009 = vpack.c.b16 %v981, %v980
        %v1010 = vpack.c.b16 %v983, %v982
        %v1011 = vpack.c.b16 %v985, %v984
        %v1012 = vpack.c.b16 %v987, %v986
        %v1013 = vpack.c.b16 %v989, %v988
        %1038 = vmatprep.subr.bf16.mxu0 0
        %1039 = vmatpush1.bf16.msra.mxu0 %v990
        %1040 = vmatprep.subr.bf16.mxu0 0
        %1041 = vmatpush1.bf16.msra.mxu0 %v991
        %1042 = vmatprep.subr.bf16.mxu0 0
        %1043 = vmatpush1.bf16.msra.mxu0 %v992
        %1044 = vmatprep.subr.bf16.mxu0 0
        %1045 = vmatpush1.bf16.msra.mxu0 %v993
        %1046 = vmatprep.subr.bf16.mxu0 0
        %1047 = vmatpush1.bf16.msra.mxu0 %v994
        %1048 = vmatprep.subr.bf16.mxu0 0
        %1049 = vmatpush1.bf16.msra.mxu0 %v995
        %1050 = vmatprep.subr.bf16.mxu0 0
        %1051 = vmatpush1.bf16.msra.mxu0 %v996
        %1052 = vmatprep.subr.bf16.mxu0 0
        %1053 = vmatpush1.bf16.msra.mxu0 %v997
        %1054 = vmatprep.subr.bf16.mxu0 0
        %1055 = vmatpush1.bf16.msra.mxu0 %v998
        %1056 = vmatprep.subr.bf16.mxu0 0
        %1057 = vmatpush1.bf16.msra.mxu0 %v999
        %1058 = vmatprep.subr.bf16.mxu0 0
        %1059 = vmatpush1.bf16.msra.mxu0 %v1000
        %1060 = vmatprep.subr.bf16.mxu0 0
        %1061 = vmatpush1.bf16.msra.mxu0 %v1001
        %1062 = vmatprep.subr.bf16.mxu0 0
        %1063 = vmatpush1.bf16.msra.mxu0 %v1002
        %1064 = vmatprep.subr.bf16.mxu0 0
        %1065 = vmatpush1.bf16.msra.mxu0 %v1003
        %1066 = vmatprep.subr.bf16.mxu0 0
        %1067 = vmatpush1.bf16.msra.mxu0 %v1004
        %1068 = vmatprep.subr.bf16.mxu0 0
        %1069 = vmatpush1.bf16.msra.mxu0 %v1005
        %1070 = vmatprep.mubr.bf16.mxu0 %v790
        %1071 = vmatmul.mubr.bf16.gmra.mrb[0].mxu0 %v826
        %v1072 = vpop.f32.mrb[0].mxu0
        %v1073 = vadd.f32 0.0, %v1072
        %v1074 = vpop.f32.mrb[0].mxu0
        %v1075 = vpop.f32.mrb[0].mxu0
        %v1076 = vadd.f32 0.0, %v1075
        %v1077 = vpop.f32.mrb[0].mxu0
        %1078 = vmatprep.mubr.bf16.mxu0 %v791
        %1079 = vmatmul.mubr.bf16.gmra.mrb[0].mxu0 %v827
        %v1080 = vpop.f32.mrb[0].mxu0
        %v1081 = vadd.f32 0.0, %v1080
        %v1082 = vpop.f32.mrb[0].mxu0
        %v1083 = vpop.f32.mrb[0].mxu0
        %v1084 = vadd.f32 0.0, %v1083
        %v1085 = vpop.f32.mrb[0].mxu0
        %1086 = vmatprep.mubr.bf16.mxu0 %v792
        %1087 = vmatmul.mubr.bf16.gmra.mrb[0].mxu0 %v828
        %v1088 = vpop.f32.mrb[0].mxu0
        %v1089 = vadd.f32 0.0, %v1088
        %v1090 = vpop.f32.mrb[0].mxu0
        %v1091 = vpop.f32.mrb[0].mxu0
        %v1092 = vadd.f32 0.0, %v1091
        %v1093 = vpop.f32.mrb[0].mxu0
        %1094 = vmatprep.mubr.bf16.mxu0 %v793
        %1095 = vmatmul.mubr.bf16.gmra.mrb[0].mxu0 %v829
        %v1096 = vpop.f32.mrb[0].mxu0
        %v1097 = vadd.f32 0.0, %v1096
        %v1098 = vpop.f32.mrb[0].mxu0
        %v1099 = vpop.f32.mrb[0].mxu0
        %v1100 = vadd.f32 0.0, %v1099
        %v1101 = vpop.f32.mrb[0].mxu0
        %1102 = vdwg.mxu0
        %1103 = vmatprep.subr.bf16.mxu0 0
        %1104 = vmatpush1.bf16.msra.mxu0 %v1006
        %1105 = vmatprep.subr.bf16.mxu0 0
        %1106 = vmatpush1.bf16.msra.mxu0 %v1007
        %1107 = vmatprep.subr.bf16.mxu0 0
        %1108 = vmatpush1.bf16.msra.mxu0 %v1008
        %1109 = vmatprep.subr.bf16.mxu0 0
        %1110 = vmatpush1.bf16.msra.mxu0 %v1009
        %1111 = vmatprep.subr.bf16.mxu0 0
        %1112 = vmatpush1.bf16.msra.mxu0 %v1010
        %1113 = vmatprep.subr.bf16.mxu0 0
        %1114 = vmatpush1.bf16.msra.mxu0 %v1011
        %1115 = vmatprep.subr.bf16.mxu0 0
        %1116 = vmatpush1.bf16.msra.mxu0 %v1012
        %1117 = vmatprep.subr.bf16.mxu0 0
        %1118 = vmatpush1.bf16.msra.mxu0 %v1013
        %1119 = vmatprep.subr.bf16.mxu0 0
        %1120 = vmatpush1.bf16.msra.mxu0 0
        %1121 = vmatprep.subr.bf16.mxu0 0
        %1122 = vmatpush1.bf16.msra.mxu0 0
        %1123 = vmatprep.subr.bf16.mxu0 0
        %1124 = vmatpush1.bf16.msra.mxu0 0
        %1125 = vmatprep.subr.bf16.mxu0 0
        %1126 = vmatpush1.bf16.msra.mxu0 0
        %1127 = vmatprep.subr.bf16.mxu0 0
        %1128 = vmatpush1.bf16.msra.mxu0 0
        %1129 = vmatprep.subr.bf16.mxu0 0
        %1130 = vmatpush1.bf16.msra.mxu0 0
        %1131 = vmatprep.subr.bf16.mxu0 0
        %1132 = vmatpush1.bf16.msra.mxu0 0
        %1133 = vmatprep.subr.bf16.mxu0 0
        %1134 = vmatpush1.bf16.msra.mxu0 0
        %1135 = vmatprep.mubr.bf16.mxu0 0
        %1136 = vmatmul.mubr.bf16.gmra.mrb[0].mxu0 %v842
        %v1137 = vpop.f32.mrb[0].mxu0
        %v1138 = vadd.f32 %v1073, %v1137
        %v1139 = vpop.f32.mrb[0].mxu0
        %v1140 = vpop.f32.mrb[0].mxu0
        %v1141 = vadd.f32 %v1076, %v1140
        %v1142 = vpop.f32.mrb[0].mxu0
        %1143 = vmatprep.mubr.bf16.mxu0 0
        %1144 = vmatmul.mubr.bf16.gmra.mrb[0].mxu0 %v843
        %v1145 = vpop.f32.mrb[0].mxu0
        %v1146 = vadd.f32 %v1081, %v1145
        %v1147 = vpop.f32.mrb[0].mxu0
        %v1148 = vpop.f32.mrb[0].mxu0
        %v1149 = vadd.f32 %v1084, %v1148
        %v1150 = vpop.f32.mrb[0].mxu0
        %1151 = vmatprep.mubr.bf16.mxu0 0
        %1152 = vmatmul.mubr.bf16.gmra.mrb[0].mxu0 %v844
        %v1153 = vpop.f32.mrb[0].mxu0
        %v1154 = vadd.f32 %v1089, %v1153
        %v1155 = vpop.f32.mrb[0].mxu0
        %v1156 = vpop.f32.mrb[0].mxu0
        %v1157 = vadd.f32 %v1092, %v1156
        %v1158 = vpop.f32.mrb[0].mxu0
        %1159 = vmatprep.mubr.bf16.mxu0 0
        %1160 = vmatmul.mubr.bf16.gmra.mrb[0].mxu0 %v845
        %v1161 = vpop.f32.mrb[0].mxu0
        %v1162 = vadd.f32 %v1097, %v1161
        %v1163 = vpop.f32.mrb[0].mxu0
        %v1164 = vpop.f32.mrb[0].mxu0
        %v1165 = vadd.f32 %v1100, %v1164
        %v1166 = vpop.f32.mrb[0].mxu0
        %1167 = vdwg.mxu0
        %v1168 = vadd.f32 %v738, %v1138
        %v1169 = vadd.f32 %v739, %v1141
        %v1170 = vadd.f32 %v740, %v1146
        %v1171 = vadd.f32 %v741, %v1149
        %v1172 = vadd.f32 %v742, %v1154
        %v1173 = vadd.f32 %v743, %v1157
        %v1174 = vadd.f32 %v744, %v1162
        %v1175 = vadd.f32 %v745, %v1165
        %v1176 = vlaneseq
        %v1177 = vshrl.u32 %v1176, 7
        %v1178 = vsub.s32 4, %v1177
        %v1179 = vrot.slane %v257, %v1178
        %v1180 = vadd.f32 %v1168, %v1179
        %v1181 = vadd.f32 %v1169, %v1179
        %v1182 = vadd.f32 %v1170, %v1179
        %v1183 = vadd.f32 %v1171, %v1179
        %v1184 = vadd.f32 %v1172, %v1179
        %v1185 = vadd.f32 %v1173, %v1179
        %v1186 = vadd.f32 %v1174, %v1179
        %v1187 = vadd.f32 %v1175, %v1179
        %vm1188 = vcmp.ge.f32.partialorder %v1180, 0.0
        %vm1189 = vcmp.ge.f32.partialorder %v1181, 0.0
        %vm1190 = vcmp.ge.f32.partialorder %v1182, 0.0
        %vm1191 = vcmp.ge.f32.partialorder %v1183, 0.0
        %vm1192 = vcmp.ge.f32.partialorder %v1184, 0.0
        %vm1193 = vcmp.ge.f32.partialorder %v1185, 0.0
        %vm1194 = vcmp.ge.f32.partialorder %v1186, 0.0
        %vm1195 = vcmp.ge.f32.partialorder %v1187, 0.0
        %v1196 = vlaneseq
        %v1197 = vshrl.u32 %v1196, 7
        %v1198 = vsub.s32 7, %v1197
        %v1199 = vrot.slane %v257, %v1198
        %v1200 = vmul.f32 %v1180, %v1199
        %v1201 = vmul.f32 %v1181, %v1199
        %v1202 = vmul.f32 %v1182, %v1199
        %v1203 = vmul.f32 %v1183, %v1199
        %v1204 = vmul.f32 %v1184, %v1199
        %v1205 = vmul.f32 %v1185, %v1199
        %v1206 = vmul.f32 %v1186, %v1199
        %v1207 = vmul.f32 %v1187, %v1199
        %v1208 = vsel %vm1188, %v1180, %v1200
        %v1209 = vsel %vm1189, %v1181, %v1201
        %v1210 = vsel %vm1190, %v1182, %v1202
        %v1211 = vsel %vm1191, %v1183, %v1203
        %v1212 = vsel %vm1192, %v1184, %v1204
        %v1213 = vsel %vm1193, %v1185, %v1205
        %v1214 = vsel %vm1194, %v1186, %v1206
        %v1215 = vsel %vm1195, %v1187, %v1207
        %v1216 = vlaneseq
        %v1217 = vshrl.u32 %v1216, 7
        %v1218 = vsub.s32 5, %v1217
        %v1219 = vrot.slane %v257, %v1218
        %v1220 = vadd.f32 %v1208, %v1219
        %v1221 = vadd.f32 %v1209, %v1219
        %v1222 = vadd.f32 %v1210, %v1219
        %v1223 = vadd.f32 %v1211, %v1219
        %v1224 = vadd.f32 %v1212, %v1219
        %v1225 = vadd.f32 %v1213, %v1219
        %v1226 = vadd.f32 %v1214, %v1219
        %v1227 = vadd.f32 %v1215, %v1219
        %1228 = vst [vmem:[%s245] sm:$0xff] %v1220
        %1229 = vst [vmem:[%s245 + $0x8] sm:$0xff] %v1221
        %1230 = vst [vmem:[%s245 + $0x10] sm:$0xff] %v1222
        %1231 = vst [vmem:[%s245 + $0x18] sm:$0xff] %v1223
        %1232 = vst [vmem:[%s245 + $0x20] sm:$0xff] %v1224
        %1233 = vst [vmem:[%s245 + $0x28] sm:$0xff] %v1225
        %1234 = vst [vmem:[%s245 + $0x30] sm:$0xff] %v1226
        %1235 = vst [vmem:[%s245 + $0x38] sm:$0xff] %v1227
        %s1236 = sand.u32 %s119, 1
        %s1237 = scalar_lea.sflag [#allocation4], %s1236
        %s1238 = sand.u32 %s119, 1
        %s1239 = smul.addr %s1238, 64
        %s1240 = scalar_lea.vmem [#allocation8], %s1239
        // Predicated region
        $region49: #{tpu_custom_call.1} parent=35 // pred_check
          %p1241 = pneg %p129
        $region50: #{tpu_custom_call.1} parent=35 // pred_check_branch
          %1243 = sbr.rel (%p1241) target = $region52
        $region51: #{tpu_custom_call.1} parent=35 // pred_region
          %s1244 = smul.u32 4, %s22
          %s1246 = ssub.s32 1024, 1024
          %1247 = vsyncadd %s1237, %s1246
          %s1248 = smul.addr %s1244, 2
          %s1249 = smul.addr %s1248, 128
          %s1250 = scalar_lea.hbm %s4, %s1249
          %s1251 = sshll.u32 %s1240, 4
          %s1252 = int_to_ptr.vmem [resolvable:$true] %s1251
          %1257 = dma.vmem_to_hbm [thread:$0]  %s1252, 1024, %s1250, %s1237, 128, 128, 8
        $region52: #{tpu_custom_call.1} parent=35 // pred_fallthru
          _
      $region36: #{tpu_custom_call.1} parent=5 // pred_fallthru
        _
      %p1258 = scmp.le.s32.totalorder 2, %s17
      // Predicated region
      $region53: #{tpu_custom_call.1} parent=5 // pred_check
        %p1259 = pneg %p1258
      $region54: #{tpu_custom_call.1} parent=5 // pred_check_branch
        %1261 = sbr.rel (%p1259) target = $region56
      $region55: #{tpu_custom_call.1} parent=5 // pred_region
        %s1262 = ssub.s32 %s17, 2
        // Predicated region
        $region57: #{tpu_custom_call.1} parent=55 // pred_check
          %p1263 = pneg %p135
        $region58: #{tpu_custom_call.1} parent=55 // pred_check_branch
          %1265 = sbr.rel (%p1263) target = $region60
        $region59: #{tpu_custom_call.1} parent=55 // pred_region
          %s1266 = sand.u32 %s120, 1
          %s1267 = scalar_lea.sflag [#allocation4], %s1266
          %s1268 = sand.u32 %s120, 1
          %s1269 = smul.addr %s1268, 64
          %s1270 = scalar_lea.vmem [#allocation8], %s1269
          %1271 = dma.done %s1267, 1024
        $region60: #{tpu_custom_call.1} parent=55 // pred_fallthru
          _
      $region56: #{tpu_custom_call.1} parent=5 // pred_fallthru
        _
    $region6: #{tpu_custom_call.1} parent=1 // loop_footer
      %s21 = sadd.s32 1, %s17
    $region7: #{tpu_custom_call.1} parent=1 // loop_footer_branch
      %16 = sbr.rel target = $region3
    $region8: #{tpu_custom_call.1} parent=1 // loop_exit
      _
    %1272 = vsyncpa [#allocation3], 1
    %s1273 = scalar_lea.sflag [#allocation3], 1
    %1274 = vsyncpa %s1273, 1
    %1275 = vsyncpa [#allocation6], 1
    %1276 = vsyncpa [#allocation4], 1
    %s1277 = scalar_lea.sflag [#allocation4], 1
    %1278 = vsyncpa %s1277, 1

</llo_original>
